<compile_context>
chip_gen: v7x
topology: tpu7x:2x2x1
jax: 0.10.0
libtpu: 0.0.40
codegen_flags: <defaults>
</compile_context>

<pallas_src>
import math

import numpy as np
import jax
import jax.numpy as jnp
from jax.experimental import pallas as pl
from jax.experimental.pallas import tpu as pltpu


def _round_up(n, m):
    return ((n + m - 1) // m) * m


def prepare_fourier_weight(weight):
    """Fold the 2*pi scale and the transpose into the parameter once.

    weight: [out_features//2, in_features] -> [in_features, out_features//2].
    This is a constant; compute it at init time and cache it.
    """
    return (2.0 * math.pi) * weight.T


def _make_kernel(in_features, use_vpu):
    def kernel(x_ref, wt_ref, o_ref):
        x = x_ref[...].astype(jnp.float32)   # [tile_b, in_features]
        wt = wt_ref[...]                     # [in_features, half] (pre-scaled by 2*pi)
        if use_vpu:
            # Unrolled rank-1 products on the VPU: K is tiny, an MXU matmul
            # would pad K up to 128 and pay fill/drain for nothing.
            f = x[:, 0:1] * wt[0:1, :]
            for k in range(1, in_features):
                f = f + x[:, k:k + 1] * wt[k:k + 1, :]
        else:
            f = jnp.dot(x, wt, preferred_element_type=jnp.float32)
        # cos/sin on the EUP (f32 math); two lane-dense slab stores, cast only
        # on store so bf16 output halves HBM write traffic when requested.
        o_ref[:, 0, :] = jnp.cos(f).astype(o_ref.dtype)
        o_ref[:, 1, :] = jnp.sin(f).astype(o_ref.dtype)

    return kernel


def _pick_tile_b(B, in_features, half, out_itemsize, vmem_budget_bytes=20 << 20):
    """Largest multiple-of-8 row tile whose double-buffered x+out tiles fit the
    budget, with lane padding accounted for; guarantees >= 2 grid steps when
    B > 8 (v7x megacore + pipelining)."""
    in_pad = _round_up(in_features, 128)
    half_pad = _round_up(half, 128)
    wt_bytes = 4 * in_pad * half_pad                      # resident weight tile
    budget = max(vmem_budget_bytes - 2 * wt_bytes, 1 << 20)
    # double-buffered streaming tiles: f32 input + out_dtype output
    bytes_per_row = 2 * (4 * in_pad + out_itemsize * 2 * half_pad)
    tile = budget // max(bytes_per_row, 1)
    tile = max(8, min(4096, (tile // 8) * 8))
    if B <= 8:
        return B                                           # single full block
    if tile >= B:
        tile = _round_up(pl.cdiv(B, 2), 8)                 # force >= 2 grid steps
    return tile


def fourier_features(x, wt_scaled, out_dtype=jnp.float32):
    """x: [B, in_features]; wt_scaled: [in_features, out_features//2]
    (from prepare_fourier_weight). Returns [B, out_features] in out_dtype."""
    B, in_features = x.shape
    in_f2, half = wt_scaled.shape
    assert in_f2 == in_features
    out_features = 2 * half
    out_itemsize = np.dtype(out_dtype).itemsize

    tile_b = _pick_tile_b(B, in_features, half, out_itemsize)
    grid = (pl.cdiv(B, tile_b),)
    use_vpu = in_features <= 16

    cost = pl.CostEstimate(
        flops=2 * B * in_features * half,
        transcendentals=B * out_features,
        bytes_accessed=(x.size * x.dtype.itemsize
                        + wt_scaled.size * wt_scaled.dtype.itemsize
                        + B * out_features * out_itemsize),
    )

    out3 = pl.pallas_call(
        _make_kernel(in_features, use_vpu),
        out_shape=jax.ShapeDtypeStruct((B, 2, half), out_dtype),
        grid=grid,
        in_specs=[
            # Row tile of the input; feature dim full-extent (< 128 anyway).
            pl.BlockSpec((tile_b, in_features), lambda i: (i, 0)),
            # Small pre-scaled weight, resident across all grid steps.
            pl.BlockSpec((in_features, half), lambda i: (0, 0)),
        ],
        out_specs=pl.BlockSpec((tile_b, 2, half), lambda i: (i, 0, 0)),
        compiler_params=pltpu.CompilerParams(
            dimension_semantics=("parallel",),   # megacore sharding on v7x
            vmem_limit_bytes=32 << 20,
        ),
        cost_estimate=cost,
    )(x, wt_scaled)

    # Free reshape (merges contiguous trailing dims): [B, 2, half] -> [B, 2*half],
    # i.e. exactly concat([cos(f), sin(f)], axis=-1).
    return out3.reshape(B, out_features)


if __name__ == "__main__":
    # Module config (synthetic, deterministic init — no checkpoint loading).
    in_features = 4
    out_features = 32  # must be even
    std = 1.0
    batch = 8

    key = jax.random.PRNGKey(0)
    k_w, k_x = jax.random.split(key)
    weight = jax.random.normal(k_w, (out_features // 2, in_features), jnp.float32) * std
    x = jax.random.normal(k_x, (batch, in_features), jnp.float32)

    wt_scaled = prepare_fourier_weight(weight)  # constant; cache in production

    # f32 output (bit-for-bit same semantics as the PyTorch forward).
    out = jax.block_until_ready(fourier_features(x, wt_scaled))

    # Pure-JAX reference check.
    f_ref = 2.0 * math.pi * (x @ weight.T)
    ref = jnp.concatenate([jnp.cos(f_ref), jnp.sin(f_ref)], axis=-1)
    assert out.shape == (batch, out_features)
    assert jnp.allclose(out, ref, atol=1e-4, rtol=1e-4)

    # bf16 output path (halves HBM write traffic when the consumer tolerates it).
    out_bf16 = jax.block_until_ready(
        fourier_features(x, wt_scaled, out_dtype=jnp.bfloat16))
    assert out_bf16.dtype == jnp.bfloat16
    assert jnp.allclose(out_bf16.astype(jnp.float32), ref, atol=2e-2, rtol=2e-2)

    print("KERNEL_OK")
</pallas_src>

<mosaic_0001>
module attributes {stable_mosaic.version = 11 : i64} {
  func.func @kernel(%arg0: i32, %arg1: memref<8x4xf32, #tpu.memory_space<vmem>>, %arg2: memref<4x16xf32, #tpu.memory_space<vmem>>, %arg3: memref<8x2x16xf32, #tpu.memory_space<vmem>>) attributes {dimension_semantics = [#tpu.dimension_semantics<parallel>], iteration_bounds = array<i64: 1>, scalar_prefetch = 0 : i64, scratch_operands = 0 : i64, tpu.core_type = #tpu.core_type<tc>, window_params = [{transform_indices = @transform_0, window_bounds = array<i64: 8, 4>}, {pipeline_mode = #tpu.pipeline_mode<synchronous>, transform_indices = @transform_1, window_bounds = array<i64: 4, 16>}, {transform_indices = @transform_2, window_bounds = array<i64: 8, 2, 16>}]} {
    %c0 = arith.constant 0 : index
    %c0_0 = arith.constant 0 : index
    %0 = vector.load %arg1[%c0, %c0_0] : memref<8x4xf32, #tpu.memory_space<vmem>>, vector<8x4xf32>
    %c0_1 = arith.constant 0 : index
    %c0_2 = arith.constant 0 : index
    %1 = vector.load %arg2[%c0_1, %c0_2] : memref<4x16xf32, #tpu.memory_space<vmem>>, vector<4x16xf32>
    %2 = vector.extract_strided_slice %0 {offsets = [0, 0], sizes = [8, 1], strides = [1, 1]} : vector<8x4xf32> to vector<8x1xf32>
    %3 = vector.extract_strided_slice %1 {offsets = [0, 0], sizes = [1, 16], strides = [1, 1]} : vector<4x16xf32> to vector<1x16xf32>
    %4 = vector.broadcast %2 : vector<8x1xf32> to vector<8x16xf32>
    %5 = vector.broadcast %3 : vector<1x16xf32> to vector<8x16xf32>
    %6 = arith.mulf %4, %5 : vector<8x16xf32>
    %7 = vector.extract_strided_slice %0 {offsets = [0, 1], sizes = [8, 1], strides = [1, 1]} : vector<8x4xf32> to vector<8x1xf32>
    %8 = vector.extract_strided_slice %1 {offsets = [1, 0], sizes = [1, 16], strides = [1, 1]} : vector<4x16xf32> to vector<1x16xf32>
    %9 = vector.broadcast %7 : vector<8x1xf32> to vector<8x16xf32>
    %10 = vector.broadcast %8 : vector<1x16xf32> to vector<8x16xf32>
    %11 = arith.mulf %9, %10 : vector<8x16xf32>
    %12 = arith.addf %6, %11 : vector<8x16xf32>
    %13 = vector.extract_strided_slice %0 {offsets = [0, 2], sizes = [8, 1], strides = [1, 1]} : vector<8x4xf32> to vector<8x1xf32>
    %14 = vector.extract_strided_slice %1 {offsets = [2, 0], sizes = [1, 16], strides = [1, 1]} : vector<4x16xf32> to vector<1x16xf32>
    %15 = vector.broadcast %13 : vector<8x1xf32> to vector<8x16xf32>
    %16 = vector.broadcast %14 : vector<1x16xf32> to vector<8x16xf32>
    %17 = arith.mulf %15, %16 : vector<8x16xf32>
    %18 = arith.addf %12, %17 : vector<8x16xf32>
    %19 = vector.extract_strided_slice %0 {offsets = [0, 3], sizes = [8, 1], strides = [1, 1]} : vector<8x4xf32> to vector<8x1xf32>
    %20 = vector.extract_strided_slice %1 {offsets = [3, 0], sizes = [1, 16], strides = [1, 1]} : vector<4x16xf32> to vector<1x16xf32>
    %21 = vector.broadcast %19 : vector<8x1xf32> to vector<8x16xf32>
    %22 = vector.broadcast %20 : vector<1x16xf32> to vector<8x16xf32>
    %23 = arith.mulf %21, %22 : vector<8x16xf32>
    %24 = arith.addf %18, %23 : vector<8x16xf32>
    %25 = math.cos %24 : vector<8x16xf32>
    %c0_3 = arith.constant 0 : index
    %c0_4 = arith.constant 0 : index
    %c0_5 = arith.constant 0 : index
    %26 = vector.load %arg3[%c0_3, %c0_4, %c0_5] : memref<8x2x16xf32, #tpu.memory_space<vmem>>, vector<8x1x16xf32>
    %27 = vector.shape_cast %26 : vector<8x1x16xf32> to vector<8x16xf32>
    %28 = vector.shape_cast %25 : vector<8x16xf32> to vector<8x1x16xf32>
    tpu.vector_store %arg3[%c0_3, %c0_4, %c0_5], %28 {strides = array<i32>} : memref<8x2x16xf32, #tpu.memory_space<vmem>>, vector<8x1x16xf32>,
    %29 = math.sin %24 : vector<8x16xf32>
    %c0_6 = arith.constant 0 : index
    %c1 = arith.constant 1 : index
    %c0_7 = arith.constant 0 : index
    %30 = vector.load %arg3[%c0_6, %c1, %c0_7] : memref<8x2x16xf32, #tpu.memory_space<vmem>>, vector<8x1x16xf32>
    %31 = vector.shape_cast %30 : vector<8x1x16xf32> to vector<8x16xf32>
    %32 = vector.shape_cast %29 : vector<8x16xf32> to vector<8x1x16xf32>
    tpu.vector_store %arg3[%c0_6, %c1, %c0_7], %32 {strides = array<i32>} : memref<8x2x16xf32, #tpu.memory_space<vmem>>, vector<8x1x16xf32>,
    return
  }
  func.func @transform_0(%arg0: i32) -> (i32, i32) {
    %c0_i32 = arith.constant 0 : i32
    %c0_i32_0 = arith.constant 0 : i32
    return %arg0, %c0_i32 : i32, i32
  }
  func.func @transform_1(%arg0: i32) -> (i32, i32) {
    %c0_i32 = arith.constant 0 : i32
    %c0_i32_0 = arith.constant 0 : i32
    %c0_i32_1 = arith.constant 0 : i32
    return %c0_i32, %c0_i32_0 : i32, i32
  }
  func.func @transform_2(%arg0: i32) -> (i32, i32, i32) {
    %c0_i32 = arith.constant 0 : i32
    %c0_i32_0 = arith.constant 0 : i32
    %c0_i32_1 = arith.constant 0 : i32
    return %arg0, %c0_i32, %c0_i32_0 : i32, i32, i32
  }
}

</mosaic_0001>

<llo_original>
// kernel: tpu_custom_call.1
$region0: #{tpu_custom_call.1}
  #allocation0 [shape = 'u32[]', space=smem, size = 0x4, offset = 0x4, fixed_abs, tag = 'smem constant byte address 0x4 - core index']
  #allocation1 [shape = 'u32[144,128]{1,0:T(1,128)}', space=vmem, size = 0x12000, scoped, tag = 'internal scratch']
  %s0 = inlined_call_operand.vmem [shape: f32[8,4], index: 0, kind: input, shape index: {}]
  %s1 = inlined_call_operand.vmem [shape: f32[4,16], index: 1, kind: input, shape index: {}]
  %s2 = inlined_call_operand.hbm [shape: f32[8,2,16], index: 2, kind: output, shape index: {}]
  %s3 = sld [smem:[#allocation0]]
  $region18: #{tpu_custom_call.1} parent=0
    _
  %s5 = ssub.s32 1, %s3
  %s6 = scalar_select 0, %s5, %s3
  $region1: #{tpu_custom_call.1} parent=0
    #allocation2 [shape = 'u8[8192]{0}', space=vmem, size = 0x2000, scoped, tag = 'output window, operand 0, single buffered']
    #allocation3 [shape = 's32[1]{0}', space=sflag, size = 0x4, scoped, tag = 'scoped memory for tpu_custom_call.1']
    %7 = vsyncpa [#allocation3], 0
    // Predicated region
    $region2: #{tpu_custom_call.1} parent=1 // pred_check
      _
    $region3: #{tpu_custom_call.1} parent=1 // pred_check_branch
      %9 = sbr.rel (0) target = $region5
    $region4: #{tpu_custom_call.1} parent=1 // pred_region
      _
    $region5: #{tpu_custom_call.1} parent=1 // pred_fallthru
      _
    // Predicated region
    $region6: #{tpu_custom_call.1} parent=1 // pred_check
      _
    $region7: #{tpu_custom_call.1} parent=1 // pred_check_branch
      %11 = sbr.rel (0) target = $region9
    $region8: #{tpu_custom_call.1} parent=1 // pred_region
      _
    $region9: #{tpu_custom_call.1} parent=1 // pred_fallthru
      _
    %v12 = vld [vmem:[%s0] sm:$0xff]
    %v13 = vld [vmem:[%s1] sm:$0xf]
    %15 = vset.pattern.permute.xlu0 0
    %16 = vperm.xlu0 %15, %v12
    %v17 = vpop.permute.xlu0 %16
    %v19 = vlaneseq
    %v20 = vshrl.u32 %v19, 7
    %v21 = vsub.s32 0, %v20
    %v22 = vrot.slane %v13, %v21
    %v23 = vmul.f32 %v17, %v22
    %24 = vset.pattern.permute.xlu0 1
    %25 = vperm.xlu0 %24, %v12
    %v26 = vpop.permute.xlu0 %25
    %v28 = vlaneseq
    %v29 = vshrl.u32 %v28, 7
    %v30 = vsub.s32 1, %v29
    %v31 = vrot.slane %v13, %v30
    %v32 = vmul.f32 %v26, %v31
    %v33 = vadd.f32 %v23, %v32
    %34 = vset.pattern.permute.xlu0 2
    %35 = vperm.xlu0 %34, %v12
    %v36 = vpop.permute.xlu0 %35
    %v38 = vlaneseq
    %v39 = vshrl.u32 %v38, 7
    %v40 = vsub.s32 2, %v39
    %v41 = vrot.slane %v13, %v40
    %v42 = vmul.f32 %v36, %v41
    %v43 = vadd.f32 %v33, %v42
    %44 = vset.pattern.permute.xlu0 3
    %45 = vperm.xlu0 %44, %v12
    %v46 = vpop.permute.xlu0 %45
    %v48 = vlaneseq
    %v49 = vshrl.u32 %v48, 7
    %v50 = vsub.s32 3, %v49
    %v51 = vrot.slane %v13, %v50
    %v52 = vmul.f32 %v46, %v51
    %v53 = vadd.f32 %v43, %v52
    %v54 = vand.u32 2147483647, %v53
    %vm55 = vcmp.le.f32.partialorder %v54, 0.7853982
    %vm56 = vcmp.lt.s32.totalorder %v53, 0
    %v57 = vand.u32 %v53, 2139095040
    %v58 = vshrl.u32 %v57, 23
    %v59 = vsub.s32 %v58, 127
    %v60 = vand.u32 2147483647, %v53
    %v61 = vand.u32 %v60, 8388607
    %v62 = vor.u32 %v61, 8388608
    %v63 = vsub.s32 0, %v62
    %v64 = vadd.s32 %v59, 1
    %vm65 = vcmp.gt.s32.totalorder %v64, 0
    %v66 = vsel %vm65, %v64, 0
    %v67 = vshrl.u32 %v66, 5
    %v68 = vand.u32 %v66, 31
    %v69 = vsub.s32 32, %v68
    %v70 = vshrl.u32 683565275, %v69
    %v71 = vshll.u32 683565275, %v68
    %v72 = vshrl.u32 2475754826, %v69
    %v73 = vor.u32 %v71, %v72
    %v74 = vshll.u32 2475754826, %v68
    %v75 = vshrl.u32 2131351028, %v69
    %v76 = vor.u32 %v74, %v75
    %v77 = vshll.u32 2131351028, %v68
    %v78 = vshrl.u32 2102212464, %v69
    %v79 = vor.u32 %v77, %v78
    %v80 = vshll.u32 2102212464, %v68
    %v81 = vshrl.u32 920167782, %v69
    %v82 = vor.u32 %v80, %v81
    %v83 = vshll.u32 920167782, %v68
    %v84 = vshrl.u32 1326507024, %v69
    %v85 = vor.u32 %v83, %v84
    %vm86 = vcmp.lt.s32.totalorder %v67, 1
    %vm87 = vcmp.lt.s32.totalorder %v67, 2
    %vm88 = vcmp.lt.s32.totalorder %v67, 3
    %vm89 = vcmp.lt.s32.totalorder %v67, 4
    %v90 = vsel %vm86, %v70, %v73
    %v91 = vsel %vm89, %v79, 2102212464
    %v92 = vsel %vm88, %v76, %v91
    %v93 = vsel %vm87, %v90, %v92
    %v94 = vsel %vm86, %v73, %v76
    %v95 = vsel %vm89, %v82, 920167782
    %v96 = vsel %vm88, %v79, %v95
    %v97 = vsel %vm87, %v94, %v96
    %v98 = vsel %vm86, %v76, %v79
    %v99 = vsel %vm89, %v85, 1326507024
    %v100 = vsel %vm88, %v82, %v99
    %v101 = vsel %vm87, %v98, %v100
    %v102 = vshll.u32 %v62, 8
    %v103 = vmul.u32.u64.compose %v102, %v101
    %v104 = vextract.low.u32 %v103
    %v105 = vextract.high.u32 %v103
    %v106 = vmul.u32.u64.compose %v102, %v97
    %v107 = vextract.low.u32 %v106
    %v108 = vextract.high.u32 %v106
    %v109 = vmul.u32 %v102, %v93
    %v110 = vadd.s32 %v105, %v107
    %vm111 = vc.u32 %v105, %v107
    %v112 = vadd.s32 %v108, 1
    %v113 = vsel %vm111, %v112, %v108
    %v114 = vadd.s32 %v109, %v113
    %v115 = vadd.s32 %v114, 536870912
    %v116 = vshrl.u32 %v115, 30
    %v117 = vshll.u32 %v116, 30
    %v118 = vsub.s32 %v114, %v117
    %vm119 = vcmp.lt.s32.totalorder %v118, 0
    %v120 = vsub.s32 0, %v118
    %v121 = vsel %vm119, %v120, %v118
    %v122 = vclz %v121
    %v123 = vsub.s32 %v122, 2
    %vm124 = vcmp.gt.s32.totalorder 0, %v123
    %v125 = vsel %vm124, 0, %v123
    %v126 = vsub.s32 32, %v125
    %v127 = vshll.u32 %v118, %v125
    %v128 = vshrl.u32 %v110, %v126
    %v129 = vor.u32 %v127, %v128
    %v130 = vsub.s32 4294967266, %v125
    %v131 = vadd.s32 %v130, 127
    %v132 = vshll.u32 %v131, 23
    %v133 = vor.u32 4788187, %v132
    %v134 = vand.u32 2147483647, %v133
    %v136 = vcvt.s32.f32 %v129
    %v137 = vmul.f32 %v136, %v134
    %v138 = vxor.u32 %v137, 2147483648
    %v139 = vsel %vm56, %v138, %v137
    %v140 = vsub.s32 4, %v116
    %v141 = vsel %vm56, %v140, %v116
    %v142 = vsel %vm55, %v53, %v139
    %v143 = vsel %vm55, 0, %v141
    %v144 = vcosq.f32.pop %v142
    %v145 = vsinq.f32.pop %v142
    %vm146 = vweird.f32 %v53
    %v147 = vand.u32 %v143, 3
    %vm148 = vcmp.lt.s32.totalorder %v147, 2
    %vm149 = vcmp.eq.s32.totalorder %v147, 0
    %v150 = vxor.u32 %v145, 2147483648
    %v151 = vsel %vm149, %v144, %v150
    %vm152 = vcmp.eq.s32.totalorder %v147, 2
    %v153 = vxor.u32 %v144, 2147483648
    %v154 = vsel %vm152, %v153, %v145
    %v155 = vsel %vm148, %v151, %v154
    %v156 = vsel %vm146, nan, %v155
    %v158 = vcombine.high %v156, %v156
    %v160 = vunpack.c.l.s4 1966171168
    %v161 = vunpack.c.0.s8 %v160
    %v162 = vlaneseq
    %v163 = vshrl.u32 %v162, 7
    %v164 = vsub.s32 %v161, %v163
    %v165 = vrot.slane %v156, %v164
    %v167 = vunpack.c.l.s4 1966171168
    %v168 = vunpack.c.0.s8 %v167
    %v169 = vlaneseq
    %v170 = vshrl.u32 %v169, 7
    %v171 = vsub.s32 %v168, %v170
    %v172 = vrot.slane %v158, %v171
    %v173 = vcombine.high %v165, %v165
    %v174 = vcombine.high %v172, %v172
    %v176 = vunpack.c.l.s4 1966171168
    %v177 = vunpack.c.0.s8 %v176
    %v178 = vlaneseq
    %v179 = vshrl.u32 %v178, 7
    %v180 = vsub.s32 %v177, %v179
    %v181 = vrot.slane %v165, %v180
    %v183 = vunpack.c.l.s4 1966171168
    %v184 = vunpack.c.0.s8 %v183
    %v185 = vlaneseq
    %v186 = vshrl.u32 %v185, 7
    %v187 = vsub.s32 %v184, %v186
    %v188 = vrot.slane %v172, %v187
    %v190 = vunpack.c.l.s4 1966171168
    %v191 = vunpack.c.0.s8 %v190
    %v192 = vlaneseq
    %v193 = vshrl.u32 %v192, 7
    %v194 = vsub.s32 %v191, %v193
    %v195 = vrot.slane %v173, %v194
    %v197 = vunpack.c.l.s4 1966171168
    %v198 = vunpack.c.0.s8 %v197
    %v199 = vlaneseq
    %v200 = vshrl.u32 %v199, 7
    %v201 = vsub.s32 %v198, %v200
    %v202 = vrot.slane %v174, %v201
    %v203 = vcombine.high %v181, %v181
    %v204 = vcombine.high %v188, %v188
    %v205 = vcombine.high %v195, %v195
    %v206 = vcombine.high %v202, %v202
    %vm215 = vcmask 122880
    %216 = vst.msk [vmem:[#allocation2] sm:$0x1] %vm215, %v181
    %217 = vst.msk [vmem:[#allocation2 + $0x2] sm:$0x1] %vm215, %v195
    %218 = vst.msk [vmem:[#allocation2 + $0x4] sm:$0x1] %vm215, %v203
    %219 = vst.msk [vmem:[#allocation2 + $0x6] sm:$0x1] %vm215, %v205
    %220 = vst.msk [vmem:[#allocation2 + $0x8] sm:$0x1] %vm215, %v188
    %221 = vst.msk [vmem:[#allocation2 + $0xa] sm:$0x1] %vm215, %v202
    %222 = vst.msk [vmem:[#allocation2 + $0xc] sm:$0x1] %vm215, %v204
    %223 = vst.msk [vmem:[#allocation2 + $0xe] sm:$0x1] %vm215, %v206
    %v224 = vand.u32 2147483647, %v53
    %vm225 = vcmp.le.f32.partialorder %v224, 0.7853982
    %vm226 = vcmp.lt.s32.totalorder %v53, 0
    %v227 = vand.u32 %v53, 2139095040
    %v228 = vshrl.u32 %v227, 23
    %v229 = vsub.s32 %v228, 127
    %v230 = vand.u32 2147483647, %v53
    %v231 = vand.u32 %v230, 8388607
    %v232 = vor.u32 %v231, 8388608
    %v233 = vsub.s32 0, %v232
    %v234 = vadd.s32 %v229, 1
    %vm235 = vcmp.gt.s32.totalorder %v234, 0
    %v236 = vsel %vm235, %v234, 0
    %v237 = vshrl.u32 %v236, 5
    %v238 = vand.u32 %v236, 31
    %v239 = vsub.s32 32, %v238
    %v240 = vshrl.u32 683565275, %v239
    %v241 = vshll.u32 683565275, %v238
    %v242 = vshrl.u32 2475754826, %v239
    %v243 = vor.u32 %v241, %v242
    %v244 = vshll.u32 2475754826, %v238
    %v245 = vshrl.u32 2131351028, %v239
    %v246 = vor.u32 %v244, %v245
    %v247 = vshll.u32 2131351028, %v238
    %v248 = vshrl.u32 2102212464, %v239
    %v249 = vor.u32 %v247, %v248
    %v250 = vshll.u32 2102212464, %v238
    %v251 = vshrl.u32 920167782, %v239
    %v252 = vor.u32 %v250, %v251
    %v253 = vshll.u32 920167782, %v238
    %v254 = vshrl.u32 1326507024, %v239
    %v255 = vor.u32 %v253, %v254
    %vm256 = vcmp.lt.s32.totalorder %v237, 1
    %vm257 = vcmp.lt.s32.totalorder %v237, 2
    %vm258 = vcmp.lt.s32.totalorder %v237, 3
    %vm259 = vcmp.lt.s32.totalorder %v237, 4
    %v260 = vsel %vm256, %v240, %v243
    %v261 = vsel %vm259, %v249, 2102212464
    %v262 = vsel %vm258, %v246, %v261
    %v263 = vsel %vm257, %v260, %v262
    %v264 = vsel %vm256, %v243, %v246
    %v265 = vsel %vm259, %v252, 920167782
    %v266 = vsel %vm258, %v249, %v265
    %v267 = vsel %vm257, %v264, %v266
    %v268 = vsel %vm256, %v246, %v249
    %v269 = vsel %vm259, %v255, 1326507024
    %v270 = vsel %vm258, %v252, %v269
    %v271 = vsel %vm257, %v268, %v270
    %v272 = vshll.u32 %v232, 8
    %v273 = vmul.u32.u64.compose %v272, %v271
    %v274 = vextract.low.u32 %v273
    %v275 = vextract.high.u32 %v273
    %v276 = vmul.u32.u64.compose %v272, %v267
    %v277 = vextract.low.u32 %v276
    %v278 = vextract.high.u32 %v276
    %v279 = vmul.u32 %v272, %v263
    %v280 = vadd.s32 %v275, %v277
    %vm281 = vc.u32 %v275, %v277
    %v282 = vadd.s32 %v278, 1
    %v283 = vsel %vm281, %v282, %v278
    %v284 = vadd.s32 %v279, %v283
    %v285 = vadd.s32 %v284, 536870912
    %v286 = vshrl.u32 %v285, 30
    %v287 = vshll.u32 %v286, 30
    %v288 = vsub.s32 %v284, %v287
    %vm289 = vcmp.lt.s32.totalorder %v288, 0
    %v290 = vsub.s32 0, %v288
    %v291 = vsel %vm289, %v290, %v288
    %v292 = vclz %v291
    %v293 = vsub.s32 %v292, 2
    %vm294 = vcmp.gt.s32.totalorder 0, %v293
    %v295 = vsel %vm294, 0, %v293
    %v296 = vsub.s32 32, %v295
    %v297 = vshll.u32 %v288, %v295
    %v298 = vshrl.u32 %v280, %v296
    %v299 = vor.u32 %v297, %v298
    %v300 = vsub.s32 4294967266, %v295
    %v301 = vadd.s32 %v300, 127
    %v302 = vshll.u32 %v301, 23
    %v303 = vor.u32 4788187, %v302
    %v304 = vand.u32 2147483647, %v303
    %v306 = vcvt.s32.f32 %v299
    %v307 = vmul.f32 %v306, %v304
    %v308 = vxor.u32 %v307, 2147483648
    %v309 = vsel %vm226, %v308, %v307
    %v310 = vsub.s32 4, %v286
    %v311 = vsel %vm226, %v310, %v286
    %v312 = vsel %vm225, %v53, %v309
    %v313 = vsel %vm225, 0, %v311
    %v314 = vcosq.f32.pop %v312
    %v315 = vsinq.f32.pop %v312
    %vm316 = vweird.f32 %v53
    %v317 = vadd.s32 %v313, 3
    %v318 = vand.u32 %v317, 3
    %vm319 = vcmp.lt.s32.totalorder %v318, 2
    %vm320 = vcmp.eq.s32.totalorder %v318, 0
    %v321 = vxor.u32 %v315, 2147483648
    %v322 = vsel %vm320, %v314, %v321
    %vm323 = vcmp.eq.s32.totalorder %v318, 2
    %v324 = vxor.u32 %v314, 2147483648
    %v325 = vsel %vm323, %v324, %v315
    %v326 = vsel %vm319, %v322, %v325
    %v327 = vsel %vm316, nan, %v326
    %v329 = vcombine.high %v327, %v327
    %v331 = vunpack.c.l.s4 1966171168
    %v332 = vunpack.c.0.s8 %v331
    %v333 = vlaneseq
    %v334 = vshrl.u32 %v333, 7
    %v335 = vsub.s32 %v332, %v334
    %v336 = vrot.slane %v327, %v335
    %v338 = vunpack.c.l.s4 1966171168
    %v339 = vunpack.c.0.s8 %v338
    %v340 = vlaneseq
    %v341 = vshrl.u32 %v340, 7
    %v342 = vsub.s32 %v339, %v341
    %v343 = vrot.slane %v329, %v342
    %v344 = vcombine.high %v336, %v336
    %v345 = vcombine.high %v343, %v343
    %v347 = vunpack.c.l.s4 1966171168
    %v348 = vunpack.c.0.s8 %v347
    %v349 = vlaneseq
    %v350 = vshrl.u32 %v349, 7
    %v351 = vsub.s32 %v348, %v350
    %v352 = vrot.slane %v336, %v351
    %v354 = vunpack.c.l.s4 1966171168
    %v355 = vunpack.c.0.s8 %v354
    %v356 = vlaneseq
    %v357 = vshrl.u32 %v356, 7
    %v358 = vsub.s32 %v355, %v357
    %v359 = vrot.slane %v343, %v358
    %v361 = vunpack.c.l.s4 1966171168
    %v362 = vunpack.c.0.s8 %v361
    %v363 = vlaneseq
    %v364 = vshrl.u32 %v363, 7
    %v365 = vsub.s32 %v362, %v364
    %v366 = vrot.slane %v344, %v365
    %v368 = vunpack.c.l.s4 1966171168
    %v369 = vunpack.c.0.s8 %v368
    %v370 = vlaneseq
    %v371 = vshrl.u32 %v370, 7
    %v372 = vsub.s32 %v369, %v371
    %v373 = vrot.slane %v345, %v372
    %v374 = vcombine.high %v352, %v352
    %v375 = vcombine.high %v359, %v359
    %v376 = vcombine.high %v366, %v366
    %v377 = vcombine.high %v373, %v373
    %386 = vst.msk [vmem:[#allocation2 + $0x1] sm:$0x1] %vm215, %v352
    %387 = vst.msk [vmem:[#allocation2 + $0x3] sm:$0x1] %vm215, %v366
    %388 = vst.msk [vmem:[#allocation2 + $0x5] sm:$0x1] %vm215, %v374
    %389 = vst.msk [vmem:[#allocation2 + $0x7] sm:$0x1] %vm215, %v376
    %390 = vst.msk [vmem:[#allocation2 + $0x9] sm:$0x1] %vm215, %v359
    %391 = vst.msk [vmem:[#allocation2 + $0xb] sm:$0x1] %vm215, %v373
    %392 = vst.msk [vmem:[#allocation2 + $0xd] sm:$0x1] %vm215, %v375
    %393 = vst.msk [vmem:[#allocation2 + $0xf] sm:$0x1] %vm215, %v377
    // Predicated region
    $region10: #{tpu_custom_call.1} parent=1 // pred_check
      _
    $region11: #{tpu_custom_call.1} parent=1 // pred_check_branch
      %395 = sbr.rel (0) target = $region13
    $region12: #{tpu_custom_call.1} parent=1 // pred_region
      %s397 = ssub.s32 256, 256
      %398 = vsyncadd [#allocation3], %s397
      %s399 = sshll.u32 [#allocation2], 4
      %s400 = int_to_ptr.vmem [resolvable:$true] %s399
      %405 = dma.vmem_to_hbm [thread:$0]  %s400, 256, %s2, [#allocation3], 32, 32, 2
    $region13: #{tpu_custom_call.1} parent=1 // pred_fallthru
      _
    // Predicated region
    $region14: #{tpu_custom_call.1} parent=1 // pred_check
      _
    $region15: #{tpu_custom_call.1} parent=1 // pred_check_branch
      %407 = sbr.rel (0) target = $region17
    $region16: #{tpu_custom_call.1} parent=1 // pred_region
      %408 = dma.done [#allocation3], 256
    $region17: #{tpu_custom_call.1} parent=1 // pred_fallthru
      _
    %409 = vsyncpa [#allocation3], 1

</llo_original>
